<compile_context>
chip_gen: v6e
topology: v6e:2x2x1
jax: 0.10.0
libtpu: 0.0.40
codegen_flags: <defaults>
</compile_context>

<pallas_src>
import functools

import jax
import jax.numpy as jnp
from jax import lax
from jax.experimental import pallas as pl
from jax.experimental.pallas import tpu as pltpu


_BLOCK_BUDGET_BYTES = 4 * 1024 * 1024  # per input block; double-buffered ~8 MiB VMEM


def _sublane_granule(dtype):
    return {1: 32, 2: 16}.get(jnp.dtype(dtype).itemsize, 8)


def _pick_tile(dim, granule, cap):
    """Block size for `dim`: the full dim if it fits under `cap`, otherwise the
    largest multiple of `granule` <= cap (partial tail blocks handled by
    masking / masked output stores)."""
    if dim <= cap:
        return dim
    return max(granule, (cap // granule) * granule)


def _mean_mid_kernel(x_ref, o_ref, acc_ref, *, red, tr, inv_red, need_mask):
    # x_ref: (TP, TR, TPOST)   o_ref / acc_ref: (TP, TPOST)
    k = pl.program_id(2)

    @pl.when(k == 0)
    def _init():
        acc_ref[...] = jnp.zeros_like(acc_ref)

    x = x_ref[...].astype(jnp.float32)
    if need_mask:  # static: only emitted when tr does not divide red
        idx = lax.broadcasted_iota(jnp.int32, x.shape, 1)
        x = jnp.where(k * tr + idx < red, x, 0.0)
    acc_ref[...] += jnp.sum(x, axis=1)

    @pl.when(k == pl.num_programs(2) - 1)
    def _finalize():
        o_ref[...] = (acc_ref[...] * inv_red).astype(o_ref.dtype)


def _mean_last_kernel(x_ref, o_ref, acc_ref, *, red, tr, inv_red, need_mask):
    # x_ref: (TPRE, TRED)   o_ref / acc_ref: (1, TPRE)  (lane-dense output)
    k = pl.program_id(1)

    @pl.when(k == 0)
    def _init():
        acc_ref[...] = jnp.zeros_like(acc_ref)

    x = x_ref[...].astype(jnp.float32)
    if need_mask:
        idx = lax.broadcasted_iota(jnp.int32, x.shape, 1)
        x = jnp.where(k * tr + idx < red, x, 0.0)
    acc_ref[...] += jnp.sum(x, axis=1)[None, :]

    @pl.when(k == pl.num_programs(1) - 1)
    def _finalize():
        o_ref[...] = (acc_ref[...] * inv_red).astype(o_ref.dtype)


@functools.partial(jax.jit, static_argnames=("axis",))
def average_pool_1d_along_axis(x, axis):
    """Pallas equivalent of torch.mean(x, dim=axis) for floating-point x."""
    if not jnp.issubdtype(x.dtype, jnp.floating):
        # torch.mean rejects integer inputs; silently truncating would be wrong.
        raise TypeError(f"average_pool_1d_along_axis expects a floating dtype, got {x.dtype}")

    ndim = x.ndim
    axis = axis % ndim
    shape = x.shape
    pre = 1
    for d in shape[:axis]:
        pre *= d
    red = shape[axis]
    post = 1
    for d in shape[axis + 1:]:
        post *= d
    out_shape = shape[:axis] + shape[axis + 1:]

    if red == 0:
        return jnp.full(out_shape, jnp.nan, dtype=x.dtype)
    inv_red = 1.0 / red

    itemsize = jnp.dtype(x.dtype).itemsize
    gran = _sublane_granule(x.dtype)
    budget_elems = max(1, _BLOCK_BUDGET_BYTES // itemsize)

    if post == 1:
        # Reducing over the contiguous last axis: lane reduction with a
        # lane-dense (1, TPRE) output block.
        x2 = x.reshape(pre, red)
        tred = _pick_tile(red, 128, 1024)
        tpre_cap = max(128, min(2048, budget_elems // max(1, tred)))
        tpre = _pick_tile(pre, 128, tpre_cap)
        grid = (pl.cdiv(pre, tpre), pl.cdiv(red, tred))
        kernel = functools.partial(
            _mean_last_kernel, red=red, tr=tred, inv_red=inv_red,
            need_mask=(red % tred != 0))
        out2 = pl.pallas_call(
            kernel,
            out_shape=jax.ShapeDtypeStruct((1, pre), x.dtype),
            grid_spec=pltpu.PrefetchScalarGridSpec(
                num_scalar_prefetch=0,
                grid=grid,
                in_specs=[pl.BlockSpec((tpre, tred), lambda i, k: (i, k))],
                out_specs=pl.BlockSpec((1, tpre), lambda i, k: (0, i)),
                scratch_shapes=[pltpu.VMEM((1, tpre), jnp.float32)]),
            compiler_params=pltpu.CompilerParams(
                dimension_semantics=("parallel", "arbitrary")),
        )(x2)
        return out2.reshape(out_shape)

    # General case: reduce the middle axis of (PRE, RED, POST).
    x3 = x.reshape(pre, red, post)
    tpost = _pick_tile(post, 128, 512)                      # lane-dense output tiles
    tr_cap = max(gran, min(512, budget_elems // max(1, gran * tpost)))
    tr = _pick_tile(red, gran, tr_cap)                      # reduction tile (f32 acc)
    tp_cap = max(gran, min(512, budget_elems // max(1, tr * tpost)))
    tp = _pick_tile(pre, gran, tp_cap)                      # pack PRE rows per block
    grid = (pl.cdiv(pre, tp), pl.cdiv(post, tpost), pl.cdiv(red, tr))
    kernel = functools.partial(
        _mean_mid_kernel, red=red, tr=tr, inv_red=inv_red,
        need_mask=(red % tr != 0))
    out3 = pl.pallas_call(
        kernel,
        out_shape=jax.ShapeDtypeStruct((pre, post), x.dtype),
        grid_spec=pltpu.PrefetchScalarGridSpec(
            num_scalar_prefetch=0,
            grid=grid,
            in_specs=[pl.BlockSpec((tp, tr, tpost), lambda i, j, k: (i, k, j))],
            out_specs=pl.BlockSpec((tp, tpost), lambda i, j, k: (i, j)),
            scratch_shapes=[pltpu.VMEM((tp, tpost), jnp.float32)]),
        compiler_params=pltpu.CompilerParams(
            dimension_semantics=("parallel", "parallel", "arbitrary")),
    )(x3)
    return out3.reshape(out_shape)


if __name__ == "__main__":
    key = jax.random.PRNGKey(0)

    tests = [
        ((2, 8, 32), 1, jnp.float32),     # typical TripletModel use: pool seq axis of (B,S,H)
        ((2, 8, 32), 2, jnp.float32),     # last-axis path (lane reduction, lane-dense output)
        ((2, 8, 32), 0, jnp.float32),     # leading-axis reduction
        ((2, 8, 32), 1, jnp.bfloat16),    # low-precision input, f32 accumulation
        ((4, 700, 256), 1, jnp.float32),  # tiled RED with tail masking (mid path)
        ((8, 2000), 1, jnp.float32),      # tiled RED with tail masking (last-axis path)
        ((12, 300, 160), 1, jnp.float32), # full-dim single-block reduction
    ]
    for t, (shape, axis, dtype) in enumerate(tests):
        x = jax.random.normal(jax.random.fold_in(key, t), shape,
                              dtype=jnp.float32).astype(dtype)
        out = jax.block_until_ready(average_pool_1d_along_axis(x, axis=axis))
        ref = jnp.mean(x.astype(jnp.float32), axis=axis)
        assert out.shape == ref.shape, (shape, axis, out.shape, ref.shape)
        tol = 1e-2 if dtype == jnp.bfloat16 else 1e-5
        assert jnp.allclose(out.astype(jnp.float32), ref, atol=tol, rtol=tol), \
            f"mismatch for shape={shape} axis={axis} dtype={dtype}"

    print("KERNEL_OK")
</pallas_src>

<mosaic_0001>
module attributes {stable_mosaic.version = 11 : i64} {
  func.func @_mean_mid_kernel(%arg0: i32, %arg1: i32, %arg2: i32, %arg3: memref<2x8x32xf32, #tpu.memory_space<vmem>>, %arg4: memref<2x32xf32, #tpu.memory_space<vmem>>, %arg5: memref<2x32xf32, #tpu.memory_space<vmem>>) attributes {dimension_semantics = [#tpu.dimension_semantics<parallel>, #tpu.dimension_semantics<parallel>, #tpu.dimension_semantics<arbitrary>], iteration_bounds = array<i64: 1, 1, 1>, scalar_prefetch = 0 : i64, scratch_operands = 1 : i64, tpu.core_type = #tpu.core_type<tc>, window_params = [{transform_indices = @transform_0, window_bounds = array<i64: 2, 8, 32>}, {transform_indices = @transform_1, window_bounds = array<i64: 2, 32>}]} {
    %c0_i32 = arith.constant 0 : i32
    %0 = arith.cmpi eq, %arg2, %c0_i32 : i32
    %1 = arith.extui %0 : i1 to i32
    %c0_i32_0 = arith.constant 0 : i32
    %2 = arith.cmpi ne, %1, %c0_i32_0 : i32
    scf.if %2 {
      %cst_9 = arith.constant 0.000000e+00 : f32
      %11 = vector.broadcast %cst_9 : f32 to vector<2x32xf32>
      %c0_10 = arith.constant 0 : index
      %c0_11 = arith.constant 0 : index
      %12 = vector.load %arg5[%c0_10, %c0_11] : memref<2x32xf32, #tpu.memory_space<vmem>>, vector<2x32xf32>
      tpu.vector_store %arg5[%c0_10, %c0_11], %11 {strides = array<i32>} : memref<2x32xf32, #tpu.memory_space<vmem>>, vector<2x32xf32>,
    } else {
    }
    %c0 = arith.constant 0 : index
    %c0_1 = arith.constant 0 : index
    %c0_2 = arith.constant 0 : index
    %3 = vector.load %arg3[%c0, %c0_1, %c0_2] : memref<2x8x32xf32, #tpu.memory_space<vmem>>, vector<2x8x32xf32>
    %c0_3 = arith.constant 0 : index
    %c0_4 = arith.constant 0 : index
    %4 = vector.load %arg5[%c0_3, %c0_4] : memref<2x32xf32, #tpu.memory_space<vmem>>, vector<2x32xf32>
    %cst = arith.constant dense<0.000000e+00> : vector<2x32xf32>
    %5 = vector.multi_reduction <add>, %3, %cst [1] : vector<2x8x32xf32> to vector<2x32xf32>
    %6 = arith.addf %4, %5 : vector<2x32xf32>
    %c0_5 = arith.constant 0 : index
    %c0_6 = arith.constant 0 : index
    %7 = vector.load %arg5[%c0_5, %c0_6] : memref<2x32xf32, #tpu.memory_space<vmem>>, vector<2x32xf32>
    tpu.vector_store %arg5[%c0_5, %c0_6], %6 {strides = array<i32>} : memref<2x32xf32, #tpu.memory_space<vmem>>, vector<2x32xf32>,
    %c0_i32_7 = arith.constant 0 : i32
    %8 = arith.cmpi eq, %arg2, %c0_i32_7 : i32
    %9 = arith.extui %8 : i1 to i32
    %c0_i32_8 = arith.constant 0 : i32
    %10 = arith.cmpi ne, %9, %c0_i32_8 : i32
    scf.if %10 {
      %c0_9 = arith.constant 0 : index
      %c0_10 = arith.constant 0 : index
      %11 = vector.load %arg5[%c0_9, %c0_10] : memref<2x32xf32, #tpu.memory_space<vmem>>, vector<2x32xf32>
      %cst_11 = arith.constant 1.250000e-01 : f32
      %12 = vector.broadcast %cst_11 : f32 to vector<2x32xf32>
      %13 = arith.mulf %11, %12 : vector<2x32xf32>
      %c0_12 = arith.constant 0 : index
      %c0_13 = arith.constant 0 : index
      %14 = vector.load %arg4[%c0_12, %c0_13] : memref<2x32xf32, #tpu.memory_space<vmem>>, vector<2x32xf32>
      tpu.vector_store %arg4[%c0_12, %c0_13], %13 {strides = array<i32>} : memref<2x32xf32, #tpu.memory_space<vmem>>, vector<2x32xf32>,
    } else {
    }
    return
  }
  func.func @transform_0(%arg0: i32, %arg1: i32, %arg2: i32) -> (i32, i32, i32) {
    %c0_i32 = arith.constant 0 : i32
    return %arg0, %arg2, %arg1 : i32, i32, i32
  }
  func.func @transform_1(%arg0: i32, %arg1: i32, %arg2: i32) -> (i32, i32) {
    %c0_i32 = arith.constant 0 : i32
    return %arg0, %arg1 : i32, i32
  }
}

</mosaic_0001>

<llo_original>
// kernel: average_pool_1d_along_axis.1
$region0: #{average_pool_1d_along_axis.1}
  #allocation0 [shape = 'u32[]', space=smem, size = 0x4, offset = 0x4, fixed_abs, tag = 'smem constant byte address 0x4 - core index']
  #allocation1 [shape = 'u32[144,128]{1,0:T(1,128)}', space=vmem, size = 0x12000, scoped, tag = 'internal scratch']
  #allocation2 [shape = 'f32[2,32]{1,0:T(2,128)}', space=vmem, size = 0x400, scoped, tag = 'scratch operand']
  %s0 = inlined_call_operand.hbm [shape: f32[2,8,32], index: 0, kind: input, shape index: {}]
  %s1 = inlined_call_operand.hbm [shape: f32[2,32], index: 1, kind: output, shape index: {}]
  %s2 = sld [smem:[#allocation0]]
  $region26: #{average_pool_1d_along_axis.1} parent=0
    _
  %s4 = ssub.s32 1, %s2
  %s5 = scalar_select 0, %s4, %s2
  $region1: #{average_pool_1d_along_axis.1} parent=0
    #allocation3 [shape = 'u8[8192]{0}', space=vmem, size = 0x2000, scoped, tag = 'input window, operand 0, single buffered']
    #allocation4 [shape = 's32[1]{0}', space=sflag, size = 0x4, scoped, tag = 'scoped memory for average_pool_1d_along_axis.1']
    #allocation5 [shape = 's32[1]{0}', space=sflag, size = 0x4, scoped, tag = 'scoped memory for average_pool_1d_along_axis.1']
    #allocation6 [shape = 'u8[1024]{0}', space=vmem, size = 0x400, scoped, tag = 'output window, operand 0, single buffered']
    %6 = vsyncpa [#allocation4], 0
    %7 = vsyncpa [#allocation5], 0
    // Predicated region
    $region2: #{average_pool_1d_along_axis.1} parent=1 // pred_check
      _
    $region3: #{average_pool_1d_along_axis.1} parent=1 // pred_check_branch
      %9 = sbr.rel (0) target = $region5
    $region4: #{average_pool_1d_along_axis.1} parent=1 // pred_region
      %s11 = ssub.s32 256, 256
      %12 = vsyncadd [#allocation4], %s11
      %s13 = sshll.u32 [#allocation3], 4
      %s14 = int_to_ptr.vmem [resolvable:$true] %s13
      %19 = dma.hbm_to_vmem [thread:$0]  %s0, 256, %s14, [#allocation4], 128, 128, 8
    $region5: #{average_pool_1d_along_axis.1} parent=1 // pred_fallthru
      _
    // Predicated region
    $region6: #{average_pool_1d_along_axis.1} parent=1 // pred_check
      _
    $region7: #{average_pool_1d_along_axis.1} parent=1 // pred_check_branch
      %21 = sbr.rel (0) target = $region9
    $region8: #{average_pool_1d_along_axis.1} parent=1 // pred_region
      %22 = dma.done [#allocation4], 256
    $region9: #{average_pool_1d_along_axis.1} parent=1 // pred_fallthru
      _
    %p23 = scmp.eq.s32.totalorder 0, 0
    // Predicated region
    $region10: #{average_pool_1d_along_axis.1} parent=1 // pred_check
      %p24 = pneg %p23
    $region11: #{average_pool_1d_along_axis.1} parent=1 // pred_check_branch
      %26 = sbr.rel (%p24) target = $region13
    $region12: #{average_pool_1d_along_axis.1} parent=1 // pred_region
      %vm27 = vcmask 254976
      %28 = vst.msk [vmem:[#allocation2] sm:$0x3] %vm27, 0.0
    $region13: #{average_pool_1d_along_axis.1} parent=1 // pred_fallthru
      _
    %v29 = vld [vmem:[#allocation3] sm:$0xff]
    %v30 = vld [vmem:[#allocation3 + $0x8] sm:$0xff]
    %v31 = vld [vmem:[#allocation2] sm:$0x3]
    %vm32 = vcmask 261120
    %v33 = vsel %vm32, %v29, 0.0
    %v34 = vrot.slane %v33, 4
    %v35 = vadd.f32 %v33, %v34
    %v36 = vrot.slane %v35, 2
    %v37 = vadd.f32 %v35, %v36
    %v38 = vrot.slane %v37, 1
    %v39 = vadd.f32 %v37, %v38
    %v40 = vsel %vm32, %v30, 0.0
    %v41 = vrot.slane %v40, 4
    %v42 = vadd.f32 %v40, %v41
    %v43 = vrot.slane %v42, 2
    %v44 = vadd.f32 %v42, %v43
    %v45 = vrot.slane %v44, 1
    %v46 = vadd.f32 %v44, %v45
    %vm49 = vcmask 1041409
    %v50 = vsel %vm49, %v46, %v39
    %v52 = vadd.f32 %v31, %v50
    %vm53 = vcmask 254976
    %54 = vst.msk [vmem:[#allocation2] sm:$0x3] %vm53, %v52
    // Predicated region
    $region14: #{average_pool_1d_along_axis.1} parent=1 // pred_check
      %p55 = pneg %p23
    $region15: #{average_pool_1d_along_axis.1} parent=1 // pred_check_branch
      %57 = sbr.rel (%p55) target = $region17
    $region16: #{average_pool_1d_along_axis.1} parent=1 // pred_region
      %v58 = vld [vmem:[#allocation2] sm:$0x3]
      %v59 = vmul.f32 %v58, 0.125
      %60 = vst.msk [vmem:[#allocation6] sm:$0x3] %vm53, %v59
    $region17: #{average_pool_1d_along_axis.1} parent=1 // pred_fallthru
      _
    // Predicated region
    $region18: #{average_pool_1d_along_axis.1} parent=1 // pred_check
      _
    $region19: #{average_pool_1d_along_axis.1} parent=1 // pred_check_branch
      %62 = sbr.rel (0) target = $region21
    $region20: #{average_pool_1d_along_axis.1} parent=1 // pred_region
      %s64 = ssub.s32 32, 32
      %65 = vsyncadd [#allocation5], %s64
      %s67 = sshll.u32 [#allocation6], 4
      %s68 = int_to_ptr.vmem [resolvable:$true] %s67
      %70 = dma.vmem_to_hbm [thread:$0]  %s68, 32, %s1, [#allocation5]
    $region21: #{average_pool_1d_along_axis.1} parent=1 // pred_fallthru
      _
    // Predicated region
    $region22: #{average_pool_1d_along_axis.1} parent=1 // pred_check
      _
    $region23: #{average_pool_1d_along_axis.1} parent=1 // pred_check_branch
      %72 = sbr.rel (0) target = $region25
    $region24: #{average_pool_1d_along_axis.1} parent=1 // pred_region
      %73 = dma.done [#allocation5], 32
    $region25: #{average_pool_1d_along_axis.1} parent=1 // pred_fallthru
      _
    %74 = vsyncpa [#allocation4], 1
    %75 = vsyncpa [#allocation5], 1

</llo_original>
